<compile_context>
chip_gen: v7x
topology: tpu7x:2x2x1
jax: 0.10.0
libtpu: 0.0.40
codegen_flags: <defaults>
</compile_context>

<pallas_src>
import functools

import jax
import jax.numpy as jnp
from jax.experimental import pallas as pl
from jax.experimental.pallas import tpu as pltpu


def _round_up(n, m):
    return ((n + m - 1) // m) * m


def deep_svdd_kernel(*refs):
    """Fused MLP forward for one batch tile, feature-major.

    refs = (x_ref, W1, b1, W2, b2, ..., WL, bL, o_ref)
      x_ref : (bt, D)        f32
      Wl    : (out_l, in_l)  compute dtype (bf16 fast path or f32)
      bl    : (out_l, 1)     f32
      o_ref : (out_L, bt)    f32
    h_0 = x^T ; h_l = relu(W_l @ h_{l-1} + b_l) ; last layer has no ReLU.
    Matmuls accumulate in f32 via preferred_element_type; bias add / ReLU stay f32.
    """
    x_ref, o_ref = refs[0], refs[-1]
    wb = refs[1:-1]
    n_layers = len(wb) // 2
    cd = wb[0].dtype

    # Layer 1: contract x's feature axis directly (transpose fused into the MXU
    # op) -> activations come out (hidden, bt): lane-dense from here on.
    h = jnp.dot(wb[0][...], x_ref[...].astype(cd).T,
                preferred_element_type=jnp.float32)
    h = jnp.maximum(h + wb[1][...], 0.0)

    for l in range(1, n_layers):
        w_ref, b_ref = wb[2 * l], wb[2 * l + 1]
        h = jnp.dot(w_ref[...], h.astype(cd),
                    preferred_element_type=jnp.float32)
        h = h + b_ref[...]
        if l < n_layers - 1:
            h = jnp.maximum(h, 0.0)

    # Output is already (out_size, bt): lane-dense store, no transpose needed.
    o_ref[...] = h.astype(o_ref.dtype)


@functools.partial(jax.jit, static_argnames=("batch_tile", "use_bf16"))
def deep_svdd_forward(x, params, *, batch_tile=8192, use_bf16=True):
    """DeepSVDD MLP forward via a single pallas_call.

    x:       (B, input_size) float32
    params:  list of (W, b) with W shaped (out_features, in_features) (PyTorch
             layout) and b shaped (out_features,)
    returns: (B, output_size) float32
    """
    B, D = x.shape
    out_size = params[-1][0].shape[0]
    cd = jnp.bfloat16 if use_bf16 else jnp.float32

    # Batch tile: multiple of 128 (lane-dense output stores). Shrink to the
    # exact batch for small B (single full-extent block, no masking). For
    # multi-step grids, prefer an even step count so v7x's two TensorCores
    # both get work on the last wave.
    bt = _round_up(max(int(batch_tile), 1), 128)
    if B <= bt:
        bt = B
    else:
        steps = pl.cdiv(B, bt)
        if steps % 2 == 1:
            bt_alt = _round_up(pl.cdiv(B, steps + 1), 128)
            if bt_alt >= 128 and pl.cdiv(B, bt_alt) % 2 == 0:
                bt = bt_alt
    steps = pl.cdiv(B, bt)

    # x streams per grid step as f32 (bf16 cast happens in-register inside the
    # kernel); weights/biases are tiny grid-invariant full blocks (~3 KB).
    in_specs = [pl.BlockSpec((bt, D), lambda i: (i, 0))]
    flat = [x]
    for (w, b) in params:
        wc = w.astype(cd)                          # (out, in) matmul operand
        bc = b.reshape(-1, 1).astype(jnp.float32)  # (out, 1) lane broadcast
        in_specs.append(pl.BlockSpec(wc.shape, lambda i: (0, 0)))
        in_specs.append(pl.BlockSpec(bc.shape, lambda i: (0, 0)))
        flat.extend([wc, bc])

    out_spec = pl.BlockSpec((out_size, bt), lambda i: (0, i))

    flops = 2 * B * sum(int(w.shape[0]) * int(w.shape[1]) for w, _ in params)
    bytes_accessed = int(x.size) * x.dtype.itemsize \
        + sum(int(a.size) * a.dtype.itemsize for a in flat[1:]) \
        + B * out_size * 4

    out_t = pl.pallas_call(
        deep_svdd_kernel,
        out_shape=jax.ShapeDtypeStruct((out_size, B), jnp.float32),
        grid_spec=pltpu.PrefetchScalarGridSpec(
            num_scalar_prefetch=0,
            grid=(steps,),
            in_specs=in_specs,
            out_specs=out_spec,
        ),
        compiler_params=pltpu.CompilerParams(
            dimension_semantics=("parallel",),
            vmem_limit_bytes=32 * 1024 * 1024,  # raises v5e's 16 MiB default; safe on v6e/v7x
        ),
        cost_estimate=pl.CostEstimate(
            flops=flops, transcendentals=0, bytes_accessed=int(bytes_accessed)),
    )(*flat)

    # (out_size, B) -> (B, out_size); fuses under jit.
    return out_t.T


def init_params(key, input_size, hidden_sizes=(32, 16, 8), output_size=1):
    """nn.Linear-style init; W stored PyTorch-style as (out_features, in_features)."""
    sizes = [input_size] + list(hidden_sizes) + [output_size]
    params = []
    for i in range(len(sizes) - 1):
        fan_in, fan_out = sizes[i], sizes[i + 1]
        key, kw, kb = jax.random.split(key, 3)
        bound = 1.0 / (fan_in ** 0.5)
        w = jax.random.uniform(kw, (fan_out, fan_in), jnp.float32, -bound, bound)
        b = jax.random.uniform(kb, (fan_out,), jnp.float32, -bound, bound)
        params.append((w, b))
    return params


def reference_forward(x, params):
    h = x
    for i, (w, b) in enumerate(params):
        h = h @ w.T + b
        if i < len(params) - 1:
            h = jnp.maximum(h, 0.0)
    return h


# TODO(synk): fit()/predict() (Adam training loop, quantile-based radius) are
# host-side training utilities, not part of the forward pass; not kernelized.

if __name__ == "__main__":
    key = jax.random.PRNGKey(0)
    k_params, k_x1, k_x2 = jax.random.split(key, 3)

    input_size = 16
    params = init_params(k_params, input_size)

    # 1) Exact f32 path, single full-extent block, tight tolerance.
    x1 = jax.random.normal(k_x1, (16, input_size), jnp.float32)
    out1 = jax.block_until_ready(deep_svdd_forward(x1, params, use_bf16=False))
    ref1 = reference_forward(x1, params)
    assert out1.shape == (16, 1)
    assert jnp.allclose(out1, ref1, atol=1e-4, rtol=1e-4), "f32 mismatch vs reference"

    # 2) bf16 fast path, multi-step grid with a ragged last block
    #    (B=300, bt=128 -> 3 steps, last block masked).
    x2 = jax.random.normal(k_x2, (300, input_size), jnp.float32)
    out2 = jax.block_until_ready(
        deep_svdd_forward(x2, params, batch_tile=128, use_bf16=True))
    ref2 = reference_forward(x2, params)
    assert out2.shape == (300, 1)
    assert jnp.allclose(out2, ref2, atol=5e-2, rtol=5e-2), "bf16 mismatch vs reference"

    print("KERNEL_OK")
</pallas_src>

<mosaic_0001>
module attributes {stable_mosaic.version = 11 : i64} {
  func.func @deep_svdd_kernel(%arg0: i32, %arg1: memref<16x16xf32, #tpu.memory_space<vmem>>, %arg2: memref<32x16xf32, #tpu.memory_space<vmem>>, %arg3: memref<32x1xf32, #tpu.memory_space<vmem>>, %arg4: memref<16x32xf32, #tpu.memory_space<vmem>>, %arg5: memref<16x1xf32, #tpu.memory_space<vmem>>, %arg6: memref<8x16xf32, #tpu.memory_space<vmem>>, %arg7: memref<8x1xf32, #tpu.memory_space<vmem>>, %arg8: memref<1x8xf32, #tpu.memory_space<vmem>>, %arg9: memref<1x1xf32, #tpu.memory_space<vmem>>, %arg10: memref<1x16xf32, #tpu.memory_space<vmem>>) attributes {dimension_semantics = [#tpu.dimension_semantics<parallel>], iteration_bounds = array<i64: 1>, scalar_prefetch = 0 : i64, scratch_operands = 0 : i64, tpu.core_type = #tpu.core_type<tc>, window_params = [{transform_indices = @transform_0, window_bounds = array<i64: 16, 16>}, {pipeline_mode = #tpu.pipeline_mode<synchronous>, transform_indices = @transform_1, window_bounds = array<i64: 32, 16>}, {pipeline_mode = #tpu.pipeline_mode<synchronous>, transform_indices = @transform_2, window_bounds = array<i64: 32, 1>}, {pipeline_mode = #tpu.pipeline_mode<synchronous>, transform_indices = @transform_3, window_bounds = array<i64: 16, 32>}, {pipeline_mode = #tpu.pipeline_mode<synchronous>, transform_indices = @transform_4, window_bounds = array<i64: 16, 1>}, {pipeline_mode = #tpu.pipeline_mode<synchronous>, transform_indices = @transform_5, window_bounds = array<i64: 8, 16>}, {pipeline_mode = #tpu.pipeline_mode<synchronous>, transform_indices = @transform_6, window_bounds = array<i64: 8, 1>}, {pipeline_mode = #tpu.pipeline_mode<synchronous>, transform_indices = @transform_7, window_bounds = array<i64: 1, 8>}, {pipeline_mode = #tpu.pipeline_mode<synchronous>, transform_indices = @transform_8, window_bounds = array<i64: 1, 1>}, {transform_indices = @transform_9, window_bounds = array<i64: 1, 16>}]} {
    %c0 = arith.constant 0 : index
    %c0_0 = arith.constant 0 : index
    %0 = vector.load %arg2[%c0, %c0_0] : memref<32x16xf32, #tpu.memory_space<vmem>>, vector<32x16xf32>
    %c0_1 = arith.constant 0 : index
    %c0_2 = arith.constant 0 : index
    %1 = vector.load %arg1[%c0_1, %c0_2] : memref<16x16xf32, #tpu.memory_space<vmem>>, vector<16x16xf32>
    %2 = tpu.transpose %1, [1, 0] : vector<16x16xf32> -> vector<16x16xf32>
    %cst = arith.constant dense<0.000000e+00> : vector<32x16xf32>
    %3 = tpu.matmul %0, %2, %cst {dimension_numbers = #tpu.dot_dimension_numbers<[1], [0], [0], [1], [0, 0, 1, 1], [], []>} : vector<32x16xf32>, vector<16x16xf32>, vector<32x16xf32> -> vector<32x16xf32>
    %c0_3 = arith.constant 0 : index
    %c0_4 = arith.constant 0 : index
    %4 = vector.load %arg3[%c0_3, %c0_4] : memref<32x1xf32, #tpu.memory_space<vmem>>, vector<32x1xf32>
    %5 = vector.broadcast %4 : vector<32x1xf32> to vector<32x16xf32>
    %6 = arith.addf %3, %5 : vector<32x16xf32>
    %cst_5 = arith.constant 0.000000e+00 : f32
    %7 = vector.broadcast %cst_5 : f32 to vector<32x16xf32>
    %8 = arith.maximumf %6, %7 : vector<32x16xf32>
    %c0_6 = arith.constant 0 : index
    %c0_7 = arith.constant 0 : index
    %9 = vector.load %arg4[%c0_6, %c0_7] : memref<16x32xf32, #tpu.memory_space<vmem>>, vector<16x32xf32>
    %cst_8 = arith.constant dense<0.000000e+00> : vector<16x16xf32>
    %10 = tpu.matmul %9, %8, %cst_8 {dimension_numbers = #tpu.dot_dimension_numbers<[1], [0], [0], [1], [0, 0, 1, 1], [], []>} : vector<16x32xf32>, vector<32x16xf32>, vector<16x16xf32> -> vector<16x16xf32>
    %c0_9 = arith.constant 0 : index
    %c0_10 = arith.constant 0 : index
    %11 = vector.load %arg5[%c0_9, %c0_10] : memref<16x1xf32, #tpu.memory_space<vmem>>, vector<16x1xf32>
    %12 = vector.broadcast %11 : vector<16x1xf32> to vector<16x16xf32>
    %13 = arith.addf %10, %12 : vector<16x16xf32>
    %cst_11 = arith.constant 0.000000e+00 : f32
    %14 = vector.broadcast %cst_11 : f32 to vector<16x16xf32>
    %15 = arith.maximumf %13, %14 : vector<16x16xf32>
    %c0_12 = arith.constant 0 : index
    %c0_13 = arith.constant 0 : index
    %16 = vector.load %arg6[%c0_12, %c0_13] : memref<8x16xf32, #tpu.memory_space<vmem>>, vector<8x16xf32>
    %cst_14 = arith.constant dense<0.000000e+00> : vector<8x16xf32>
    %17 = tpu.matmul %16, %15, %cst_14 {dimension_numbers = #tpu.dot_dimension_numbers<[1], [0], [0], [1], [0, 0, 1, 1], [], []>} : vector<8x16xf32>, vector<16x16xf32>, vector<8x16xf32> -> vector<8x16xf32>
    %c0_15 = arith.constant 0 : index
    %c0_16 = arith.constant 0 : index
    %18 = vector.load %arg7[%c0_15, %c0_16] : memref<8x1xf32, #tpu.memory_space<vmem>>, vector<8x1xf32>
    %19 = vector.broadcast %18 : vector<8x1xf32> to vector<8x16xf32>
    %20 = arith.addf %17, %19 : vector<8x16xf32>
    %cst_17 = arith.constant 0.000000e+00 : f32
    %21 = vector.broadcast %cst_17 : f32 to vector<8x16xf32>
    %22 = arith.maximumf %20, %21 : vector<8x16xf32>
    %c0_18 = arith.constant 0 : index
    %c0_19 = arith.constant 0 : index
    %23 = vector.load %arg8[%c0_18, %c0_19] : memref<1x8xf32, #tpu.memory_space<vmem>>, vector<1x8xf32>
    %cst_20 = arith.constant dense<0.000000e+00> : vector<1x16xf32>
    %24 = tpu.matmul %23, %22, %cst_20 {dimension_numbers = #tpu.dot_dimension_numbers<[1], [0], [0], [1], [0, 0, 1, 1], [], []>} : vector<1x8xf32>, vector<8x16xf32>, vector<1x16xf32> -> vector<1x16xf32>
    %c0_21 = arith.constant 0 : index
    %c0_22 = arith.constant 0 : index
    %25 = vector.load %arg9[%c0_21, %c0_22] : memref<1x1xf32, #tpu.memory_space<vmem>>, vector<1x1xf32>
    %26 = vector.broadcast %25 : vector<1x1xf32> to vector<1x16xf32>
    %27 = arith.addf %24, %26 : vector<1x16xf32>
    %c0_23 = arith.constant 0 : index
    %c0_24 = arith.constant 0 : index
    %28 = vector.load %arg10[%c0_23, %c0_24] : memref<1x16xf32, #tpu.memory_space<vmem>>, vector<1x16xf32>
    tpu.vector_store %arg10[%c0_23, %c0_24], %27 {strides = array<i32>} : memref<1x16xf32, #tpu.memory_space<vmem>>, vector<1x16xf32>,
    return
  }
  func.func @transform_0(%arg0: i32) -> (i32, i32) {
    %c0_i32 = arith.constant 0 : i32
    %c0_i32_0 = arith.constant 0 : i32
    return %arg0, %c0_i32 : i32, i32
  }
  func.func @transform_1(%arg0: i32) -> (i32, i32) {
    %c0_i32 = arith.constant 0 : i32
    %c0_i32_0 = arith.constant 0 : i32
    %c0_i32_1 = arith.constant 0 : i32
    return %c0_i32, %c0_i32_0 : i32, i32
  }
  func.func @transform_2(%arg0: i32) -> (i32, i32) {
    %c0_i32 = arith.constant 0 : i32
    %c0_i32_0 = arith.constant 0 : i32
    %c0_i32_1 = arith.constant 0 : i32
    return %c0_i32, %c0_i32_0 : i32, i32
  }
  func.func @transform_3(%arg0: i32) -> (i32, i32) {
    %c0_i32 = arith.constant 0 : i32
    %c0_i32_0 = arith.constant 0 : i32
    %c0_i32_1 = arith.constant 0 : i32
    return %c0_i32, %c0_i32_0 : i32, i32
  }
  func.func @transform_4(%arg0: i32) -> (i32, i32) {
    %c0_i32 = arith.constant 0 : i32
    %c0_i32_0 = arith.constant 0 : i32
    %c0_i32_1 = arith.constant 0 : i32
    return %c0_i32, %c0_i32_0 : i32, i32
  }
  func.func @transform_5(%arg0: i32) -> (i32, i32) {
    %c0_i32 = arith.constant 0 : i32
    %c0_i32_0 = arith.constant 0 : i32
    %c0_i32_1 = arith.constant 0 : i32
    return %c0_i32, %c0_i32_0 : i32, i32
  }
  func.func @transform_6(%arg0: i32) -> (i32, i32) {
    %c0_i32 = arith.constant 0 : i32
    %c0_i32_0 = arith.constant 0 : i32
    %c0_i32_1 = arith.constant 0 : i32
    return %c0_i32, %c0_i32_0 : i32, i32
  }
  func.func @transform_7(%arg0: i32) -> (i32, i32) {
    %c0_i32 = arith.constant 0 : i32
    %c0_i32_0 = arith.constant 0 : i32
    %c0_i32_1 = arith.constant 0 : i32
    return %c0_i32, %c0_i32_0 : i32, i32
  }
  func.func @transform_8(%arg0: i32) -> (i32, i32) {
    %c0_i32 = arith.constant 0 : i32
    %c0_i32_0 = arith.constant 0 : i32
    %c0_i32_1 = arith.constant 0 : i32
    return %c0_i32, %c0_i32_0 : i32, i32
  }
  func.func @transform_9(%arg0: i32) -> (i32, i32) {
    %c0_i32 = arith.constant 0 : i32
    %c0_i32_0 = arith.constant 0 : i32
    return %c0_i32, %arg0 : i32, i32
  }
}

</mosaic_0001>

<llo_original>
// kernel: deep_svdd_forward.1
$region0: #{deep_svdd_forward.1}
  #allocation0 [shape = 'u32[]', space=smem, size = 0x4, offset = 0x4, fixed_abs, tag = 'smem constant byte address 0x4 - core index']
  #allocation1 [shape = 'u32[144,128]{1,0:T(1,128)}', space=vmem, size = 0x12000, scoped, tag = 'internal scratch']
  #allocation2 [shape = 'f32[1,1]{1,0:T(1,128)S(1)}', space=vmem, size = 0x200, scoped, tag = 'scoped memory for deep_svdd_forward.1']
  %s0 = inlined_call_operand.vmem [shape: f32[16,16], index: 0, kind: input, shape index: {}]
  %s1 = inlined_call_operand.vmem [shape: f32[32,16], index: 1, kind: input, shape index: {}]
  %s2 = inlined_call_operand.vmem [shape: f32[32,1], index: 2, kind: input, shape index: {}]
  %s3 = inlined_call_operand.vmem [shape: f32[16,32], index: 3, kind: input, shape index: {}]
  %s4 = inlined_call_operand.vmem [shape: f32[16,1], index: 4, kind: input, shape index: {}]
  %s5 = inlined_call_operand.vmem [shape: f32[8,16], index: 5, kind: input, shape index: {}]
  %s6 = inlined_call_operand.vmem [shape: f32[8,1], index: 6, kind: input, shape index: {}]
  %s7 = inlined_call_operand.vmem [shape: f32[1,8], index: 7, kind: input, shape index: {}]
  %s8 = inlined_call_operand.<no memory space> [shape: f32[1,1], index: 8, kind: input, shape index: {}]
  %s9 = inlined_call_operand.hbm [shape: f32[1,16], index: 9, kind: output, shape index: {}]
  %s10 = sld [smem:[#allocation0]]
  $region46: #{deep_svdd_forward.1} parent=0
    _
  %s12 = ssub.s32 1, %s10
  %s13 = scalar_select 0, %s12, %s10
  %v14 = vstv %s8
  %15 = vst [vmem:[#allocation2] sm:$0x1] %v14
  $region1: #{deep_svdd_forward.1} parent=0
    #allocation3 [shape = 'u8[512]{0}', space=vmem, size = 0x400, scoped, tag = 'output window, operand 0, single buffered']
    #allocation4 [shape = 's32[1]{0}', space=sflag, size = 0x4, scoped, tag = 'scoped memory for deep_svdd_forward.1']
    %16 = vsyncpa [#allocation4], 0
    // Predicated region
    $region2: #{deep_svdd_forward.1} parent=1 // pred_check
      _
    $region3: #{deep_svdd_forward.1} parent=1 // pred_check_branch
      %18 = sbr.rel (0) target = $region5
    $region4: #{deep_svdd_forward.1} parent=1 // pred_region
      _
    $region5: #{deep_svdd_forward.1} parent=1 // pred_fallthru
      _
    // Predicated region
    $region6: #{deep_svdd_forward.1} parent=1 // pred_check
      _
    $region7: #{deep_svdd_forward.1} parent=1 // pred_check_branch
      %20 = sbr.rel (0) target = $region9
    $region8: #{deep_svdd_forward.1} parent=1 // pred_region
      _
    $region9: #{deep_svdd_forward.1} parent=1 // pred_fallthru
      _
    // Predicated region
    $region10: #{deep_svdd_forward.1} parent=1 // pred_check
      _
    $region11: #{deep_svdd_forward.1} parent=1 // pred_check_branch
      %22 = sbr.rel (0) target = $region13
    $region12: #{deep_svdd_forward.1} parent=1 // pred_region
      _
    $region13: #{deep_svdd_forward.1} parent=1 // pred_fallthru
      _
    // Predicated region
    $region14: #{deep_svdd_forward.1} parent=1 // pred_check
      _
    $region15: #{deep_svdd_forward.1} parent=1 // pred_check_branch
      %24 = sbr.rel (0) target = $region17
    $region16: #{deep_svdd_forward.1} parent=1 // pred_region
      _
    $region17: #{deep_svdd_forward.1} parent=1 // pred_fallthru
      _
    // Predicated region
    $region18: #{deep_svdd_forward.1} parent=1 // pred_check
      _
    $region19: #{deep_svdd_forward.1} parent=1 // pred_check_branch
      %26 = sbr.rel (0) target = $region21
    $region20: #{deep_svdd_forward.1} parent=1 // pred_region
      _
    $region21: #{deep_svdd_forward.1} parent=1 // pred_fallthru
      _
    // Predicated region
    $region22: #{deep_svdd_forward.1} parent=1 // pred_check
      _
    $region23: #{deep_svdd_forward.1} parent=1 // pred_check_branch
      %28 = sbr.rel (0) target = $region25
    $region24: #{deep_svdd_forward.1} parent=1 // pred_region
      _
    $region25: #{deep_svdd_forward.1} parent=1 // pred_fallthru
      _
    // Predicated region
    $region26: #{deep_svdd_forward.1} parent=1 // pred_check
      _
    $region27: #{deep_svdd_forward.1} parent=1 // pred_check_branch
      %30 = sbr.rel (0) target = $region29
    $region28: #{deep_svdd_forward.1} parent=1 // pred_region
      _
    $region29: #{deep_svdd_forward.1} parent=1 // pred_fallthru
      _
    // Predicated region
    $region30: #{deep_svdd_forward.1} parent=1 // pred_check
      _
    $region31: #{deep_svdd_forward.1} parent=1 // pred_check_branch
      %32 = sbr.rel (0) target = $region33
    $region32: #{deep_svdd_forward.1} parent=1 // pred_region
      _
    $region33: #{deep_svdd_forward.1} parent=1 // pred_fallthru
      _
    // Predicated region
    $region34: #{deep_svdd_forward.1} parent=1 // pred_check
      _
    $region35: #{deep_svdd_forward.1} parent=1 // pred_check_branch
      %34 = sbr.rel (0) target = $region37
    $region36: #{deep_svdd_forward.1} parent=1 // pred_region
      _
    $region37: #{deep_svdd_forward.1} parent=1 // pred_fallthru
      _
    %v35 = vld [vmem:[%s1] sm:$0xff]
    %v36 = vld [vmem:[%s1 + $0x8] sm:$0xff]
    %v37 = vld [vmem:[%s1 + $0x10] sm:$0xff]
    %v38 = vld [vmem:[%s1 + $0x18] sm:$0xff]
    %v39 = vld [vmem:[%s0] sm:$0xff]
    %v40 = vld [vmem:[%s0 + $0x8] sm:$0xff]
    %v41 = vld [vmem:[%s2] sm:$0xff]
    %v42 = vld [vmem:[%s2 + $0x8] sm:$0xff]
    %v43 = vld [vmem:[%s2 + $0x10] sm:$0xff]
    %v44 = vld [vmem:[%s2 + $0x18] sm:$0xff]
    %46 = vset.pattern.permute.xlu0 0
    %47 = vperm.xlu0 %46, %v41
    %v48 = vpop.permute.xlu0 %47
    %51 = vset.pattern.permute.xlu0 0
    %52 = vperm.xlu0 %51, %v42
    %v53 = vpop.permute.xlu0 %52
    %56 = vset.pattern.permute.xlu0 0
    %57 = vperm.xlu0 %56, %v43
    %v58 = vpop.permute.xlu0 %57
    %61 = vset.pattern.permute.xlu0 0
    %62 = vperm.xlu0 %61, %v44
    %v63 = vpop.permute.xlu0 %62
    %vm65 = vcmask 130048
    %v67 = vsel %vm65, %v35, 0
    %v70 = vsel %vm65, %v36, 0
    %v73 = vsel %vm65, %v37, 0
    %v76 = vsel %vm65, %v38, 0
    %v79 = vsel %vm65, %v39, 0
    %v82 = vsel %vm65, %v40, 0
    %84 = vmatprep.subr.mxu0 0.0
    %85 = vmatpush1.xpose.msra.mxu0 %v79
    %86 = vmatprep.subr.mxu0 0.0
    %87 = vmatpush1.xpose.msra.mxu0 %v82
    %88 = vmatprep.subr.mxu0 0.0
    %89 = vmatpush1.xpose.msra.mxu0 0.0
    %90 = vmatprep.subr.mxu0 0.0
    %91 = vmatpush1.xpose.msra.mxu0 0.0
    %92 = vmatprep.subr.mxu0 0.0
    %93 = vmatpush1.xpose.msra.mxu0 0.0
    %94 = vmatprep.subr.mxu0 0.0
    %95 = vmatpush1.xpose.msra.mxu0 0.0
    %96 = vmatprep.subr.mxu0 0.0
    %97 = vmatpush1.xpose.msra.mxu0 0.0
    %98 = vmatprep.subr.mxu0 0.0
    %99 = vmatpush1.xpose.msra.mxu0 0.0
    %100 = vmatprep.subr.mxu0 0.0
    %101 = vmatpush1.xpose.msra.mxu0 0.0
    %102 = vmatprep.subr.mxu0 0.0
    %103 = vmatpush1.xpose.msra.mxu0 0.0
    %104 = vmatprep.subr.mxu0 0.0
    %105 = vmatpush1.xpose.msra.mxu0 0.0
    %106 = vmatprep.subr.mxu0 0.0
    %107 = vmatpush1.xpose.msra.mxu0 0.0
    %108 = vmatprep.subr.mxu0 0.0
    %109 = vmatpush1.xpose.msra.mxu0 0.0
    %110 = vmatprep.subr.mxu0 0.0
    %111 = vmatpush1.xpose.msra.mxu0 0.0
    %112 = vmatprep.subr.mxu0 0.0
    %113 = vmatpush1.xpose.msra.mxu0 0.0
    %114 = vmatprep.subr.mxu0 0.0
    %115 = vmatpush1.xpose.msra.mxu0 0.0
    %116 = vmatprep.subr.mxu0 0.0
    %117 = vmatpush1.xpose.msra.mxu0 0.0
    %118 = vmatprep.subr.mxu0 0.0
    %119 = vmatpush1.xpose.msra.mxu0 0.0
    %120 = vmatprep.subr.mxu0 0.0
    %121 = vmatpush1.xpose.msra.mxu0 0.0
    %122 = vmatprep.subr.mxu0 0.0
    %123 = vmatpush1.xpose.msra.mxu0 0.0
    %124 = vmatprep.subr.mxu0 0.0
    %125 = vmatpush1.xpose.msra.mxu0 0.0
    %126 = vmatprep.subr.mxu0 0.0
    %127 = vmatpush1.xpose.msra.mxu0 0.0
    %128 = vmatprep.subr.mxu0 0.0
    %129 = vmatpush1.xpose.msra.mxu0 0.0
    %130 = vmatprep.subr.mxu0 0.0
    %131 = vmatpush1.xpose.msra.mxu0 0.0
    %132 = vmatprep.subr.mxu0 0.0
    %133 = vmatpush1.xpose.msra.mxu0 0.0
    %134 = vmatprep.subr.mxu0 0.0
    %135 = vmatpush1.xpose.msra.mxu0 0.0
    %136 = vmatprep.subr.mxu0 0.0
    %137 = vmatpush1.xpose.msra.mxu0 0.0
    %138 = vmatprep.subr.mxu0 0.0
    %139 = vmatpush1.xpose.msra.mxu0 0.0
    %140 = vmatprep.subr.mxu0 0.0
    %141 = vmatpush1.xpose.msra.mxu0 0.0
    %142 = vmatprep.subr.mxu0 0.0
    %143 = vmatpush1.xpose.msra.mxu0 0.0
    %144 = vmatprep.subr.mxu0 0.0
    %145 = vmatpush1.xpose.msra.mxu0 0.0
    %146 = vmatprep.subr.mxu0 0.0
    %147 = vmatpush1.xpose.msra.mxu0 0.0
    %148 = vmatprep.mubr.f32.mxu0 0.0
    %149 = vmatmul.mubr.f32.gmra.mrb[0].mxu0 %v67
    %v150 = vpop.f32.mrb[0].mxu0
    %v151 = vadd.f32 %v48, %v150
    %v152 = vpop.f32.mrb[0].mxu0
    %153 = vmatprep.mubr.f32.mxu0 0.0
    %154 = vmatmul.mubr.f32.gmra.mrb[0].mxu0 %v70
    %v155 = vpop.f32.mrb[0].mxu0
    %v156 = vadd.f32 %v53, %v155
    %v157 = vpop.f32.mrb[0].mxu0
    %158 = vmatprep.mubr.f32.mxu0 0.0
    %159 = vmatmul.mubr.f32.gmra.mrb[0].mxu0 %v73
    %v160 = vpop.f32.mrb[0].mxu0
    %v161 = vadd.f32 %v58, %v160
    %v162 = vpop.f32.mrb[0].mxu0
    %163 = vmatprep.mubr.f32.mxu0 0.0
    %164 = vmatmul.mubr.f32.gmra.mrb[0].mxu0 %v76
    %v165 = vpop.f32.mrb[0].mxu0
    %v166 = vadd.f32 %v63, %v165
    %v167 = vpop.f32.mrb[0].mxu0
    %168 = vdwg.mxu0
    %v169 = vmax.f32 %v151, 0.0
    %v170 = vmax.f32 %v156, 0.0
    %v171 = vmax.f32 %v161, 0.0
    %v172 = vmax.f32 %v166, 0.0
    %v173 = vld [vmem:[%s3] sm:$0xff]
    %v174 = vld [vmem:[%s3 + $0x8] sm:$0xff]
    %v175 = vld [vmem:[%s4] sm:$0xff]
    %v176 = vld [vmem:[%s4 + $0x8] sm:$0xff]
    %178 = vset.pattern.permute.xlu0 0
    %179 = vperm.xlu0 %178, %v175
    %v180 = vpop.permute.xlu0 %179
    %183 = vset.pattern.permute.xlu0 0
    %184 = vperm.xlu0 %183, %v176
    %v185 = vpop.permute.xlu0 %184
    %vm187 = vcmask 261120
    %v189 = vsel %vm187, %v173, 0
    %v192 = vsel %vm187, %v174, 0
    %194 = vmatprep.subr.mxu0 0.0
    %195 = vmatpush1.msra.mxu0 %v169
    %196 = vmatprep.subr.mxu0 0.0
    %197 = vmatpush1.msra.mxu0 %v170
    %198 = vmatprep.subr.mxu0 0.0
    %199 = vmatpush1.msra.mxu0 %v171
    %200 = vmatprep.subr.mxu0 0.0
    %201 = vmatpush1.msra.mxu0 %v172
    %202 = vmatprep.subr.mxu0 0.0
    %203 = vmatpush1.msra.mxu0 0.0
    %204 = vmatprep.subr.mxu0 0.0
    %205 = vmatpush1.msra.mxu0 0.0
    %206 = vmatprep.subr.mxu0 0.0
    %207 = vmatpush1.msra.mxu0 0.0
    %208 = vmatprep.subr.mxu0 0.0
    %209 = vmatpush1.msra.mxu0 0.0
    %210 = vmatprep.subr.mxu0 0.0
    %211 = vmatpush1.msra.mxu0 0.0
    %212 = vmatprep.subr.mxu0 0.0
    %213 = vmatpush1.msra.mxu0 0.0
    %214 = vmatprep.subr.mxu0 0.0
    %215 = vmatpush1.msra.mxu0 0.0
    %216 = vmatprep.subr.mxu0 0.0
    %217 = vmatpush1.msra.mxu0 0.0
    %218 = vmatprep.subr.mxu0 0.0
    %219 = vmatpush1.msra.mxu0 0.0
    %220 = vmatprep.subr.mxu0 0.0
    %221 = vmatpush1.msra.mxu0 0.0
    %222 = vmatprep.subr.mxu0 0.0
    %223 = vmatpush1.msra.mxu0 0.0
    %224 = vmatprep.subr.mxu0 0.0
    %225 = vmatpush1.msra.mxu0 0.0
    %226 = vmatprep.subr.mxu0 0.0
    %227 = vmatpush1.msra.mxu0 0.0
    %228 = vmatprep.subr.mxu0 0.0
    %229 = vmatpush1.msra.mxu0 0.0
    %230 = vmatprep.subr.mxu0 0.0
    %231 = vmatpush1.msra.mxu0 0.0
    %232 = vmatprep.subr.mxu0 0.0
    %233 = vmatpush1.msra.mxu0 0.0
    %234 = vmatprep.subr.mxu0 0.0
    %235 = vmatpush1.msra.mxu0 0.0
    %236 = vmatprep.subr.mxu0 0.0
    %237 = vmatpush1.msra.mxu0 0.0
    %238 = vmatprep.subr.mxu0 0.0
    %239 = vmatpush1.msra.mxu0 0.0
    %240 = vmatprep.subr.mxu0 0.0
    %241 = vmatpush1.msra.mxu0 0.0
    %242 = vmatprep.subr.mxu0 0.0
    %243 = vmatpush1.msra.mxu0 0.0
    %244 = vmatprep.subr.mxu0 0.0
    %245 = vmatpush1.msra.mxu0 0.0
    %246 = vmatprep.subr.mxu0 0.0
    %247 = vmatpush1.msra.mxu0 0.0
    %248 = vmatprep.subr.mxu0 0.0
    %249 = vmatpush1.msra.mxu0 0.0
    %250 = vmatprep.subr.mxu0 0.0
    %251 = vmatpush1.msra.mxu0 0.0
    %252 = vmatprep.subr.mxu0 0.0
    %253 = vmatpush1.msra.mxu0 0.0
    %254 = vmatprep.subr.mxu0 0.0
    %255 = vmatpush1.msra.mxu0 0.0
    %256 = vmatprep.subr.mxu0 0.0
    %257 = vmatpush1.msra.mxu0 0.0
    %258 = vmatprep.mubr.f32.mxu0 0.0
    %259 = vmatmul.mubr.f32.gmra.mrb[0].mxu0 %v189
    %v260 = vpop.f32.mrb[0].mxu0
    %v261 = vadd.f32 %v180, %v260
    %v262 = vpop.f32.mrb[0].mxu0
    %263 = vmatprep.mubr.f32.mxu0 0.0
    %264 = vmatmul.mubr.f32.gmra.mrb[0].mxu0 %v192
    %v265 = vpop.f32.mrb[0].mxu0
    %v266 = vadd.f32 %v185, %v265
    %v267 = vpop.f32.mrb[0].mxu0
    %268 = vdwg.mxu0
    %v269 = vmax.f32 %v261, 0.0
    %v270 = vmax.f32 %v266, 0.0
    %v271 = vld [vmem:[%s5] sm:$0xff]
    %v272 = vld [vmem:[%s6] sm:$0xff]
    %274 = vset.pattern.permute.xlu0 0
    %275 = vperm.xlu0 %274, %v272
    %v276 = vpop.permute.xlu0 %275
    %v279 = vsel %vm65, %v271, 0
    %281 = vmatprep.subr.mxu0 0.0
    %282 = vmatpush1.msra.mxu0 %v269
    %283 = vmatprep.subr.mxu0 0.0
    %284 = vmatpush1.msra.mxu0 %v270
    %285 = vmatprep.subr.mxu0 0.0
    %286 = vmatpush1.msra.mxu0 0.0
    %287 = vmatprep.subr.mxu0 0.0
    %288 = vmatpush1.msra.mxu0 0.0
    %289 = vmatprep.subr.mxu0 0.0
    %290 = vmatpush1.msra.mxu0 0.0
    %291 = vmatprep.subr.mxu0 0.0
    %292 = vmatpush1.msra.mxu0 0.0
    %293 = vmatprep.subr.mxu0 0.0
    %294 = vmatpush1.msra.mxu0 0.0
    %295 = vmatprep.subr.mxu0 0.0
    %296 = vmatpush1.msra.mxu0 0.0
    %297 = vmatprep.subr.mxu0 0.0
    %298 = vmatpush1.msra.mxu0 0.0
    %299 = vmatprep.subr.mxu0 0.0
    %300 = vmatpush1.msra.mxu0 0.0
    %301 = vmatprep.subr.mxu0 0.0
    %302 = vmatpush1.msra.mxu0 0.0
    %303 = vmatprep.subr.mxu0 0.0
    %304 = vmatpush1.msra.mxu0 0.0
    %305 = vmatprep.subr.mxu0 0.0
    %306 = vmatpush1.msra.mxu0 0.0
    %307 = vmatprep.subr.mxu0 0.0
    %308 = vmatpush1.msra.mxu0 0.0
    %309 = vmatprep.subr.mxu0 0.0
    %310 = vmatpush1.msra.mxu0 0.0
    %311 = vmatprep.subr.mxu0 0.0
    %312 = vmatpush1.msra.mxu0 0.0
    %313 = vmatprep.subr.mxu0 0.0
    %314 = vmatpush1.msra.mxu0 0.0
    %315 = vmatprep.subr.mxu0 0.0
    %316 = vmatpush1.msra.mxu0 0.0
    %317 = vmatprep.subr.mxu0 0.0
    %318 = vmatpush1.msra.mxu0 0.0
    %319 = vmatprep.subr.mxu0 0.0
    %320 = vmatpush1.msra.mxu0 0.0
    %321 = vmatprep.subr.mxu0 0.0
    %322 = vmatpush1.msra.mxu0 0.0
    %323 = vmatprep.subr.mxu0 0.0
    %324 = vmatpush1.msra.mxu0 0.0
    %325 = vmatprep.subr.mxu0 0.0
    %326 = vmatpush1.msra.mxu0 0.0
    %327 = vmatprep.subr.mxu0 0.0
    %328 = vmatpush1.msra.mxu0 0.0
    %329 = vmatprep.subr.mxu0 0.0
    %330 = vmatpush1.msra.mxu0 0.0
    %331 = vmatprep.subr.mxu0 0.0
    %332 = vmatpush1.msra.mxu0 0.0
    %333 = vmatprep.subr.mxu0 0.0
    %334 = vmatpush1.msra.mxu0 0.0
    %335 = vmatprep.subr.mxu0 0.0
    %336 = vmatpush1.msra.mxu0 0.0
    %337 = vmatprep.subr.mxu0 0.0
    %338 = vmatpush1.msra.mxu0 0.0
    %339 = vmatprep.subr.mxu0 0.0
    %340 = vmatpush1.msra.mxu0 0.0
    %341 = vmatprep.subr.mxu0 0.0
    %342 = vmatpush1.msra.mxu0 0.0
    %343 = vmatprep.subr.mxu0 0.0
    %344 = vmatpush1.msra.mxu0 0.0
    %345 = vmatprep.mubr.f32.mxu0 0.0
    %346 = vmatmul.mubr.f32.gmra.mrb[0].mxu0 %v279
    %v347 = vpop.f32.mrb[0].mxu0
    %v348 = vadd.f32 %v276, %v347
    %v349 = vpop.f32.mrb[0].mxu0
    %350 = vdwg.mxu0
    %v351 = vmax.f32 %v348, 0.0
    %v352 = vld [vmem:[%s7] sm:$0x1]
    %v353 = vld [vmem:[#allocation2] sm:$0x1]
    %355 = vset.pattern.permute.xlu0 0
    %356 = vperm.xlu0 %355, %v353
    %v357 = vpop.permute.xlu0 %356
    %v359 = vlaneseq
    %v360 = vshrl.u32 %v359, 7
    %v361 = vsub.s32 0, %v360
    %v362 = vrot.slane %v357, %v361
    %vm363 = vcmask 64512
    %v365 = vsel %vm363, %v352, 0
    %367 = vmatprep.subr.mxu0 0.0
    %368 = vmatpush1.msra.mxu0 %v351
    %369 = vmatprep.subr.mxu0 0.0
    %370 = vmatpush1.msra.mxu0 0.0
    %371 = vmatprep.subr.mxu0 0.0
    %372 = vmatpush1.msra.mxu0 0.0
    %373 = vmatprep.subr.mxu0 0.0
    %374 = vmatpush1.msra.mxu0 0.0
    %375 = vmatprep.subr.mxu0 0.0
    %376 = vmatpush1.msra.mxu0 0.0
    %377 = vmatprep.subr.mxu0 0.0
    %378 = vmatpush1.msra.mxu0 0.0
    %379 = vmatprep.subr.mxu0 0.0
    %380 = vmatpush1.msra.mxu0 0.0
    %381 = vmatprep.subr.mxu0 0.0
    %382 = vmatpush1.msra.mxu0 0.0
    %383 = vmatprep.subr.mxu0 0.0
    %384 = vmatpush1.msra.mxu0 0.0
    %385 = vmatprep.subr.mxu0 0.0
    %386 = vmatpush1.msra.mxu0 0.0
    %387 = vmatprep.subr.mxu0 0.0
    %388 = vmatpush1.msra.mxu0 0.0
    %389 = vmatprep.subr.mxu0 0.0
    %390 = vmatpush1.msra.mxu0 0.0
    %391 = vmatprep.subr.mxu0 0.0
    %392 = vmatpush1.msra.mxu0 0.0
    %393 = vmatprep.subr.mxu0 0.0
    %394 = vmatpush1.msra.mxu0 0.0
    %395 = vmatprep.subr.mxu0 0.0
    %396 = vmatpush1.msra.mxu0 0.0
    %397 = vmatprep.subr.mxu0 0.0
    %398 = vmatpush1.msra.mxu0 0.0
    %399 = vmatprep.subr.mxu0 0.0
    %400 = vmatpush1.msra.mxu0 0.0
    %401 = vmatprep.subr.mxu0 0.0
    %402 = vmatpush1.msra.mxu0 0.0
    %403 = vmatprep.subr.mxu0 0.0
    %404 = vmatpush1.msra.mxu0 0.0
    %405 = vmatprep.subr.mxu0 0.0
    %406 = vmatpush1.msra.mxu0 0.0
    %407 = vmatprep.subr.mxu0 0.0
    %408 = vmatpush1.msra.mxu0 0.0
    %409 = vmatprep.subr.mxu0 0.0
    %410 = vmatpush1.msra.mxu0 0.0
    %411 = vmatprep.subr.mxu0 0.0
    %412 = vmatpush1.msra.mxu0 0.0
    %413 = vmatprep.subr.mxu0 0.0
    %414 = vmatpush1.msra.mxu0 0.0
    %415 = vmatprep.subr.mxu0 0.0
    %416 = vmatpush1.msra.mxu0 0.0
    %417 = vmatprep.subr.mxu0 0.0
    %418 = vmatpush1.msra.mxu0 0.0
    %419 = vmatprep.subr.mxu0 0.0
    %420 = vmatpush1.msra.mxu0 0.0
    %421 = vmatprep.subr.mxu0 0.0
    %422 = vmatpush1.msra.mxu0 0.0
    %423 = vmatprep.subr.mxu0 0.0
    %424 = vmatpush1.msra.mxu0 0.0
    %425 = vmatprep.subr.mxu0 0.0
    %426 = vmatpush1.msra.mxu0 0.0
    %427 = vmatprep.subr.mxu0 0.0
    %428 = vmatpush1.msra.mxu0 0.0
    %429 = vmatprep.subr.mxu0 0.0
    %430 = vmatpush1.msra.mxu0 0.0
    %431 = vmatprep.mubr.f32.mxu0 0.0
    %432 = vmatmul.mubr.f32.gmra.mrb[0].mxu0 %v365
    %v433 = vpop.f32.mrb[0].mxu0
    %v434 = vadd.f32 %v362, %v433
    %v435 = vpop.f32.mrb[0].mxu0
    %436 = vdwg.mxu0
    %vm437 = vcmask 122880
    %438 = vst.msk [vmem:[#allocation3] sm:$0x1] %vm437, %v434
    // Predicated region
    $region38: #{deep_svdd_forward.1} parent=1 // pred_check
      _
    $region39: #{deep_svdd_forward.1} parent=1 // pred_check_branch
      %440 = sbr.rel (0) target = $region41
    $region40: #{deep_svdd_forward.1} parent=1 // pred_region
      %s442 = ssub.s32 16, 16
      %443 = vsyncadd [#allocation4], %s442
      %s445 = sshll.u32 [#allocation3], 4
      %s446 = int_to_ptr.vmem [resolvable:$true] %s445
      %448 = dma.vmem_to_hbm [thread:$0]  %s446, 16, %s9, [#allocation4]
    $region41: #{deep_svdd_forward.1} parent=1 // pred_fallthru
      _
    // Predicated region
    $region42: #{deep_svdd_forward.1} parent=1 // pred_check
      _
    $region43: #{deep_svdd_forward.1} parent=1 // pred_check_branch
      %450 = sbr.rel (0) target = $region45
    $region44: #{deep_svdd_forward.1} parent=1 // pred_region
      %451 = dma.done [#allocation4], 16
    $region45: #{deep_svdd_forward.1} parent=1 // pred_fallthru
      _
    %452 = vsyncpa [#allocation4], 1

</llo_original>
